<compile_context>
chip_gen: v6e
topology: v6e:2x2x1
jax: 0.10.0
libtpu: 0.0.40
codegen_flags: <defaults>
</compile_context>

<pallas_src>
import jax
import jax.numpy as jnp
from jax import lax
from jax.experimental import pallas as pl
from jax.experimental.pallas import tpu as pltpu


def _round_up(v, m):
    return ((v + m - 1) // m) * m


def _choose_tile(dim, max_tile, align):
    """Largest multiple of `align` <= max_tile that divides `dim`.

    `dim` is already padded to a multiple of `align`, so `align` is always a
    valid fallback.  If the whole dim fits in one tile, use it directly.
    """
    if dim <= max_tile:
        return dim
    t = (max_tile // align) * align
    while t > align and dim % t != 0:
        t -= align
    return t


def _linear_kernel(x_ref, w_ref, o_ref):
    # Output block is K-resident (index_map ignores k); zero it on the first
    # K step and accumulate directly into it.  Output dtype is f32, so no
    # separate accumulator / final cast is needed.
    @pl.when(pl.program_id(2) == 0)
    def _():
        o_ref[...] = jnp.zeros_like(o_ref)

    # y[m, n] += sum_k x[m, k] * W[n, k]  (W kept in (out, in) layout,
    # contracted on its last dim -> no HBM transpose pre-pass).
    o_ref[...] += lax.dot_general(
        x_ref[...],
        w_ref[...],
        dimension_numbers=(((1,), (1,)), ((), ())),
        preferred_element_type=jnp.float32,
    )


def nett_linear_forward(x, weight, *, tm_max=512, tn_max=512, tk_max=512,
                        cast_to_bf16=False):
    """Equivalent of PyTorch `nn.Linear(F, F, bias=False)(x)`.

    x:      (B, F) float32
    weight: (F, F) float32, PyTorch convention (out_features, in_features)
    returns (B, F) float32
    """
    B, F = x.shape
    assert weight.shape == (F, F)

    # Pad to hardware alignment first (8 sublanes for M, 128 lanes for N/K),
    # then pick tiles that divide the padded dims -> no tile-sized padding.
    Mp = _round_up(B, 8)
    Np = _round_up(F, 128)
    Kp = _round_up(F, 128)

    tm = _choose_tile(Mp, tm_max, 8)
    tn = _choose_tile(Np, tn_max, 128)
    tk = _choose_tile(Kp, tk_max, 128)

    # v7x megacore: with a single M block, the "parallel" split must come from
    # the N axis — make sure it has at least 2 blocks when N is big enough.
    if Mp // tm == 1 and Np // tn < 2 and Np >= 256:
        tn = _choose_tile(Np, max(128, Np // 2), 128)

    # Zero-pad to the aligned shapes; zero K-padding is exact, and padded
    # output rows/cols are sliced off below.  For repeated calls with a fixed
    # weight, the weight padding/cast can be hoisted out of the hot path.
    x_p = x if (Mp == B and Kp == F) else jnp.pad(x, ((0, Mp - B), (0, Kp - F)))
    w_p = (
        weight
        if (Np == F and Kp == F)
        else jnp.pad(weight, ((0, Np - F), (0, Kp - F)))
    )

    if cast_to_bf16:
        # MXU is bf16-native; f32 accumulation is preserved via
        # preferred_element_type.  Changes numerics slightly.
        x_p = x_p.astype(jnp.bfloat16)
        w_p = w_p.astype(jnp.bfloat16)

    grid = (Mp // tm, Np // tn, Kp // tk)

    out = pl.pallas_call(
        _linear_kernel,
        out_shape=jax.ShapeDtypeStruct((Mp, Np), jnp.float32),
        grid_spec=pltpu.PrefetchScalarGridSpec(
            num_scalar_prefetch=0,
            grid=grid,
            in_specs=[
                # x tile: (tm, tk) at (i, k)
                pl.BlockSpec((tm, tk), lambda i, j, k: (i, k)),
                # W tile (untransposed (out, in) layout): (tn, tk) at (j, k)
                pl.BlockSpec((tn, tk), lambda i, j, k: (j, k)),
            ],
            out_specs=pl.BlockSpec((tm, tn), lambda i, j, k: (i, j)),
        ),
        compiler_params=pltpu.CompilerParams(
            dimension_semantics=("parallel", "parallel", "arbitrary"),
        ),
        cost_estimate=pl.CostEstimate(
            flops=2 * Mp * Np * Kp,
            transcendentals=0,
            # Account for grid re-reads: x streamed once per N block,
            # W streamed once per M block, output written once.
            bytes_accessed=4 * (
                (Np // tn) * Mp * Kp + (Mp // tm) * Np * Kp + Mp * Np
            ),
        ),
    )(x_p, w_p)

    if Mp != B or Np != F:
        out = out[:B, :F]
    return out


if __name__ == "__main__":
    key = jax.random.PRNGKey(0)
    k_x, k_w, k_x2, k_w2 = jax.random.split(key, 4)

    # --- Small shape matching the module's intent (num_features x num_features linear) ---
    batch = 8
    num_features = 32
    x = jax.random.normal(k_x, (batch, num_features), dtype=jnp.float32)
    bound = 1.0 / (num_features ** 0.5)
    weight = jax.random.uniform(
        k_w, (num_features, num_features), dtype=jnp.float32,
        minval=-bound, maxval=bound,
    )

    out = nett_linear_forward(x, weight)
    jax.block_until_ready(out)
    ref = x @ weight.T
    assert out.shape == (batch, num_features)
    assert jnp.allclose(out, ref, atol=1e-5, rtol=1e-5)

    # --- Larger, non-aligned shape to exercise multi-tile grid + padding path ---
    b2, f2 = 64, 300
    x2 = jax.random.normal(k_x2, (b2, f2), dtype=jnp.float32)
    bound2 = 1.0 / (f2 ** 0.5)
    w2 = jax.random.uniform(
        k_w2, (f2, f2), dtype=jnp.float32, minval=-bound2, maxval=bound2,
    )
    out2 = nett_linear_forward(x2, w2)
    jax.block_until_ready(out2)
    ref2 = x2 @ w2.T
    assert out2.shape == (b2, f2)
    assert jnp.allclose(out2, ref2, atol=1e-4, rtol=1e-4)

    print("KERNEL_OK")
</pallas_src>

<mosaic_0001>
module attributes {stable_mosaic.version = 11 : i64} {
  func.func @_linear_kernel(%arg0: i32, %arg1: i32, %arg2: i32, %arg3: memref<8x128xf32, #tpu.memory_space<vmem>>, %arg4: memref<128x128xf32, #tpu.memory_space<vmem>>, %arg5: memref<8x128xf32, #tpu.memory_space<vmem>>) attributes {dimension_semantics = [#tpu.dimension_semantics<parallel>, #tpu.dimension_semantics<parallel>, #tpu.dimension_semantics<arbitrary>], iteration_bounds = array<i64: 1, 1, 1>, scalar_prefetch = 0 : i64, scratch_operands = 0 : i64, tpu.core_type = #tpu.core_type<tc>, window_params = [{transform_indices = @transform_0, window_bounds = array<i64: 8, 128>}, {transform_indices = @transform_1, window_bounds = array<i64: 128, 128>}, {transform_indices = @transform_2, window_bounds = array<i64: 8, 128>}]} {
    %c0_i32 = arith.constant 0 : i32
    %0 = arith.cmpi eq, %arg2, %c0_i32 : i32
    %1 = arith.extui %0 : i1 to i32
    %c0_i32_0 = arith.constant 0 : i32
    %2 = arith.cmpi ne, %1, %c0_i32_0 : i32
    scf.if %2 {
      %cst_8 = arith.constant 0.000000e+00 : f32
      %9 = vector.broadcast %cst_8 : f32 to vector<8x128xf32>
      %c0_9 = arith.constant 0 : index
      %c0_10 = arith.constant 0 : index
      %10 = vector.load %arg5[%c0_9, %c0_10] : memref<8x128xf32, #tpu.memory_space<vmem>>, vector<8x128xf32>
      tpu.vector_store %arg5[%c0_9, %c0_10], %9 {strides = array<i32>} : memref<8x128xf32, #tpu.memory_space<vmem>>, vector<8x128xf32>,
    } else {
    }
    %c0 = arith.constant 0 : index
    %c0_1 = arith.constant 0 : index
    %3 = vector.load %arg5[%c0, %c0_1] : memref<8x128xf32, #tpu.memory_space<vmem>>, vector<8x128xf32>
    %c0_2 = arith.constant 0 : index
    %c0_3 = arith.constant 0 : index
    %4 = vector.load %arg3[%c0_2, %c0_3] : memref<8x128xf32, #tpu.memory_space<vmem>>, vector<8x128xf32>
    %c0_4 = arith.constant 0 : index
    %c0_5 = arith.constant 0 : index
    %5 = vector.load %arg4[%c0_4, %c0_5] : memref<128x128xf32, #tpu.memory_space<vmem>>, vector<128x128xf32>
    %cst = arith.constant dense<0.000000e+00> : vector<8x128xf32>
    %6 = tpu.matmul %4, %5, %cst {dimension_numbers = #tpu.dot_dimension_numbers<[1], [1], [0], [0], [0, 0, 1, 0], [], []>} : vector<8x128xf32>, vector<128x128xf32>, vector<8x128xf32> -> vector<8x128xf32>
    %7 = arith.addf %3, %6 : vector<8x128xf32>
    %c0_6 = arith.constant 0 : index
    %c0_7 = arith.constant 0 : index
    %8 = vector.load %arg5[%c0_6, %c0_7] : memref<8x128xf32, #tpu.memory_space<vmem>>, vector<8x128xf32>
    tpu.vector_store %arg5[%c0_6, %c0_7], %7 {strides = array<i32>} : memref<8x128xf32, #tpu.memory_space<vmem>>, vector<8x128xf32>,
    return
  }
  func.func @transform_0(%arg0: i32, %arg1: i32, %arg2: i32) -> (i32, i32) {
    %c0_i32 = arith.constant 0 : i32
    return %arg0, %arg2 : i32, i32
  }
  func.func @transform_1(%arg0: i32, %arg1: i32, %arg2: i32) -> (i32, i32) {
    %c0_i32 = arith.constant 0 : i32
    return %arg1, %arg2 : i32, i32
  }
  func.func @transform_2(%arg0: i32, %arg1: i32, %arg2: i32) -> (i32, i32) {
    %c0_i32 = arith.constant 0 : i32
    return %arg0, %arg1 : i32, i32
  }
}

</mosaic_0001>

<llo_original>
// kernel: tpu_custom_call.1
$region0: #{tpu_custom_call.1}
  #allocation0 [shape = 'u32[]', space=smem, size = 0x4, offset = 0x4, fixed_abs, tag = 'smem constant byte address 0x4 - core index']
  #allocation1 [shape = 'u32[144,128]{1,0:T(1,128)}', space=vmem, size = 0x12000, scoped, tag = 'internal scratch']
  %s0 = inlined_call_operand.hbm [shape: f32[8,128], index: 0, kind: input, shape index: {}]
  %s1 = inlined_call_operand.hbm [shape: f32[128,128], index: 1, kind: input, shape index: {}]
  %s2 = inlined_call_operand.hbm [shape: f32[8,128], index: 2, kind: output, shape index: {}]
  %s3 = sld [smem:[#allocation0]]
  $region30: #{tpu_custom_call.1} parent=0
    _
  %s5 = ssub.s32 1, %s3
  %s6 = scalar_select 0, %s5, %s3
  $region1: #{tpu_custom_call.1} parent=0
    #allocation2 [shape = 'u8[4096]{0}', space=vmem, size = 0x1000, scoped, tag = 'input window, operand 0, single buffered']
    #allocation3 [shape = 's32[1]{0}', space=sflag, size = 0x4, scoped, tag = 'scoped memory for tpu_custom_call.1']
    #allocation4 [shape = 's32[1]{0}', space=sflag, size = 0x4, scoped, tag = 'scoped memory for tpu_custom_call.1']
    #allocation5 [shape = 'u8[65536]{0}', space=vmem, size = 0x10000, scoped, tag = 'input window, operand 1, single buffered']
    #allocation6 [shape = 's32[1]{0}', space=sflag, size = 0x4, scoped, tag = 'scoped memory for tpu_custom_call.1']
    #allocation7 [shape = 'u8[4096]{0}', space=vmem, size = 0x1000, scoped, tag = 'output window, operand 0, single buffered']
    %7 = vsyncpa [#allocation3], 0
    %8 = vsyncpa [#allocation6], 0
    %9 = vsyncpa [#allocation4], 0
    // Predicated region
    $region2: #{tpu_custom_call.1} parent=1 // pred_check
      _
    $region3: #{tpu_custom_call.1} parent=1 // pred_check_branch
      %11 = sbr.rel (0) target = $region5
    $region4: #{tpu_custom_call.1} parent=1 // pred_region
      %s13 = ssub.s32 128, 128
      %14 = vsyncadd [#allocation3], %s13
      %s16 = sshll.u32 [#allocation2], 4
      %s17 = int_to_ptr.vmem [resolvable:$true] %s16
      %19 = dma.hbm_to_vmem [thread:$0]  %s0, 128, %s17, [#allocation3]
    $region5: #{tpu_custom_call.1} parent=1 // pred_fallthru
      _
    // Predicated region
    $region6: #{tpu_custom_call.1} parent=1 // pred_check
      _
    $region7: #{tpu_custom_call.1} parent=1 // pred_check_branch
      %21 = sbr.rel (0) target = $region9
    $region8: #{tpu_custom_call.1} parent=1 // pred_region
      %s23 = ssub.s32 2048, 2048
      %24 = vsyncadd [#allocation6], %s23
      %s25 = sshll.u32 [#allocation5], 4
      %s26 = int_to_ptr.vmem [resolvable:$true] %s25
      %31 = dma.hbm_to_vmem [thread:$0]  %s1, 2048, %s26, [#allocation6], 128, 128, 8
    $region9: #{tpu_custom_call.1} parent=1 // pred_fallthru
      _
    // Predicated region
    $region10: #{tpu_custom_call.1} parent=1 // pred_check
      _
    $region11: #{tpu_custom_call.1} parent=1 // pred_check_branch
      %33 = sbr.rel (0) target = $region13
    $region12: #{tpu_custom_call.1} parent=1 // pred_region
      %34 = dma.done [#allocation3], 128
    $region13: #{tpu_custom_call.1} parent=1 // pred_fallthru
      _
    // Predicated region
    $region14: #{tpu_custom_call.1} parent=1 // pred_check
      _
    $region15: #{tpu_custom_call.1} parent=1 // pred_check_branch
      %36 = sbr.rel (0) target = $region17
    $region16: #{tpu_custom_call.1} parent=1 // pred_region
      %37 = dma.done [#allocation6], 2048
    $region17: #{tpu_custom_call.1} parent=1 // pred_fallthru
      _
    %p38 = scmp.eq.s32.totalorder 0, 0
    // Predicated region
    $region18: #{tpu_custom_call.1} parent=1 // pred_check
      %p39 = pneg %p38
    $region19: #{tpu_custom_call.1} parent=1 // pred_check_branch
      %41 = sbr.rel (%p39) target = $region21
    $region20: #{tpu_custom_call.1} parent=1 // pred_region
      %42 = vst [vmem:[#allocation7] sm:$0xff] 0.0
    $region21: #{tpu_custom_call.1} parent=1 // pred_fallthru
      _
    %v43 = vld [vmem:[#allocation7] sm:$0xff]
    %v44 = vld [vmem:[#allocation2] sm:$0xff]
    %v45 = vld [vmem:[#allocation5] sm:$0xff]
    %v46 = vld [vmem:[#allocation5 + $0x8] sm:$0xff]
    %v47 = vld [vmem:[#allocation5 + $0x10] sm:$0xff]
    %v48 = vld [vmem:[#allocation5 + $0x18] sm:$0xff]
    %v49 = vld [vmem:[#allocation5 + $0x20] sm:$0xff]
    %v50 = vld [vmem:[#allocation5 + $0x28] sm:$0xff]
    %v51 = vld [vmem:[#allocation5 + $0x30] sm:$0xff]
    %v52 = vld [vmem:[#allocation5 + $0x38] sm:$0xff]
    %v53 = vld [vmem:[#allocation5 + $0x40] sm:$0xff]
    %v54 = vld [vmem:[#allocation5 + $0x48] sm:$0xff]
    %v55 = vld [vmem:[#allocation5 + $0x50] sm:$0xff]
    %v56 = vld [vmem:[#allocation5 + $0x58] sm:$0xff]
    %v57 = vld [vmem:[#allocation5 + $0x60] sm:$0xff]
    %v58 = vld [vmem:[#allocation5 + $0x68] sm:$0xff]
    %v59 = vld [vmem:[#allocation5 + $0x70] sm:$0xff]
    %v60 = vld [vmem:[#allocation5 + $0x78] sm:$0xff]
    %61 = vmatprep.subr.mxu0 0.0
    %62 = vmatpush1.xpose.msra.mxu0 %v60
    %63 = vmatprep.subr.mxu0 0.0
    %64 = vmatpush1.xpose.msra.mxu0 %v59
    %65 = vmatprep.subr.mxu0 0.0
    %66 = vmatpush1.xpose.msra.mxu0 %v58
    %67 = vmatprep.subr.mxu0 0.0
    %68 = vmatpush1.xpose.msra.mxu0 %v57
    %69 = vmatprep.subr.mxu0 0.0
    %70 = vmatpush1.xpose.msra.mxu0 %v56
    %71 = vmatprep.subr.mxu0 0.0
    %72 = vmatpush1.xpose.msra.mxu0 %v55
    %73 = vmatprep.subr.mxu0 0.0
    %74 = vmatpush1.xpose.msra.mxu0 %v54
    %75 = vmatprep.subr.mxu0 0.0
    %76 = vmatpush1.xpose.msra.mxu0 %v53
    %77 = vmatprep.subr.mxu0 0.0
    %78 = vmatpush1.xpose.msra.mxu0 %v52
    %79 = vmatprep.subr.mxu0 0.0
    %80 = vmatpush1.xpose.msra.mxu0 %v51
    %81 = vmatprep.subr.mxu0 0.0
    %82 = vmatpush1.xpose.msra.mxu0 %v50
    %83 = vmatprep.subr.mxu0 0.0
    %84 = vmatpush1.xpose.msra.mxu0 %v49
    %85 = vmatprep.subr.mxu0 0.0
    %86 = vmatpush1.xpose.msra.mxu0 %v48
    %87 = vmatprep.subr.mxu0 0.0
    %88 = vmatpush1.xpose.msra.mxu0 %v47
    %89 = vmatprep.subr.mxu0 0.0
    %90 = vmatpush1.xpose.msra.mxu0 %v46
    %91 = vmatprep.subr.mxu0 0.0
    %92 = vmatpush1.xpose.msra.mxu0 %v45
    %93 = vmatprep.subr.mxu0 0.0
    %94 = vmatpush2.xpose.msra.mxu0 0.0
    %95 = vmatprep.subr.mxu0 0.0
    %96 = vmatpush2.xpose.msra.mxu0 0.0
    %97 = vmatprep.subr.mxu0 0.0
    %98 = vmatpush2.xpose.msra.mxu0 0.0
    %99 = vmatprep.subr.mxu0 0.0
    %100 = vmatpush2.xpose.msra.mxu0 0.0
    %101 = vmatprep.subr.mxu0 0.0
    %102 = vmatpush2.xpose.msra.mxu0 0.0
    %103 = vmatprep.subr.mxu0 0.0
    %104 = vmatpush2.xpose.msra.mxu0 0.0
    %105 = vmatprep.subr.mxu0 0.0
    %106 = vmatpush2.xpose.msra.mxu0 0.0
    %107 = vmatprep.subr.mxu0 0.0
    %108 = vmatpush2.xpose.msra.mxu0 0.0
    %109 = vmatprep.subr.mxu0 0.0
    %110 = vmatpush2.xpose.msra.mxu0 0.0
    %111 = vmatprep.subr.mxu0 0.0
    %112 = vmatpush2.xpose.msra.mxu0 0.0
    %113 = vmatprep.subr.mxu0 0.0
    %114 = vmatpush2.xpose.msra.mxu0 0.0
    %115 = vmatprep.subr.mxu0 0.0
    %116 = vmatpush2.xpose.msra.mxu0 0.0
    %117 = vmatprep.subr.mxu0 0.0
    %118 = vmatpush2.xpose.msra.mxu0 0.0
    %119 = vmatprep.subr.mxu0 0.0
    %120 = vmatpush2.xpose.msra.mxu0 0.0
    %121 = vmatprep.subr.mxu0 0.0
    %122 = vmatpush2.xpose.msra.mxu0 0.0
    %123 = vmatprep.subr.mxu0 0.0
    %124 = vmatpush2.xpose.msra.mxu0 0.0
    %125 = vmatprep.mubr.f32.mxu0 0.0
    %126 = vmatmul.mubr.f32.gmra.mxu0 %v44
    %v127 = vpop.f32.mrf.mxu0
    %v128 = vadd.f32 0.0, %v127
    %v129 = vpop.f32.mrf.mxu0
    %130 = vdwg.mxu0
    %v131 = vadd.f32 %v43, %v128
    %132 = vst [vmem:[#allocation7] sm:$0xff] %v131
    // Predicated region
    $region22: #{tpu_custom_call.1} parent=1 // pred_check
      _
    $region23: #{tpu_custom_call.1} parent=1 // pred_check_branch
      %134 = sbr.rel (0) target = $region25
    $region24: #{tpu_custom_call.1} parent=1 // pred_region
      %s136 = ssub.s32 128, 128
      %137 = vsyncadd [#allocation4], %s136
      %s139 = sshll.u32 [#allocation7], 4
      %s140 = int_to_ptr.vmem [resolvable:$true] %s139
      %142 = dma.vmem_to_hbm [thread:$0]  %s140, 128, %s2, [#allocation4]
    $region25: #{tpu_custom_call.1} parent=1 // pred_fallthru
      _
    // Predicated region
    $region26: #{tpu_custom_call.1} parent=1 // pred_check
      _
    $region27: #{tpu_custom_call.1} parent=1 // pred_check_branch
      %144 = sbr.rel (0) target = $region29
    $region28: #{tpu_custom_call.1} parent=1 // pred_region
      %145 = dma.done [#allocation4], 128
    $region29: #{tpu_custom_call.1} parent=1 // pred_fallthru
      _
    %146 = vsyncpa [#allocation3], 1
    %147 = vsyncpa [#allocation6], 1
    %148 = vsyncpa [#allocation4], 1

</llo_original>
